<compile_context>
chip_gen: v5e
topology: v5e:2x2
jax: 0.10.0
libtpu: 0.0.40
codegen_flags: <defaults>
</compile_context>

<pallas_src>
import functools
import math

import jax
import jax.numpy as jnp
from jax import lax
from jax.experimental import pallas as pl
from jax.experimental.pallas import tpu as pltpu


# --------------------------------------------------------------------------
# One-time probe of pltpu.roll's rotation convention so the RoPE even/odd
# swizzle is correct regardless of backend convention (tiny, runs once).
# --------------------------------------------------------------------------
@functools.lru_cache(maxsize=None)
def _roll_matches_jnp() -> bool:
    def _kernel(x_ref, o_ref):
        o_ref[...] = pltpu.roll(x_ref[...], 1, axis=1)

    x = jnp.tile(jnp.arange(128, dtype=jnp.float32)[None, :], (8, 1))
    y = pl.pallas_call(
        _kernel, out_shape=jax.ShapeDtypeStruct((8, 128), jnp.float32))(x)
    # jnp.roll semantics: out[j] = in[j-1]  ->  out[0] == in[-1] == 127
    return bool(y[0, 0] == 127.0)


# ----------------------------- Kernel 1: QKV + RoPE -----------------------------
def qkv_rope_kernel(x_ref, wq_ref, wk_ref, wv_ref,
                    cq_ref, sq_ref, ck_ref, sk_ref,
                    q_ref, k_ref, v_ref,
                    *, n_heads, n_kv_heads, roll_like_jnp):
    x = x_ref[0]                                    # (tq, D) bf16 MXU operand

    def rope(y, cos_hd, sin_hd, n_h):
        # y: (tq, n_h*hd) f32, interleaved (re, im) pairs per head.
        c = y.shape[-1]
        cos = jnp.concatenate([cos_hd] * n_h, axis=-1)   # broadcast across heads
        sin = jnp.concatenate([sin_hd] * n_h, axis=-1)
        r_a = pltpu.roll(y, 1, axis=1)
        r_b = pltpu.roll(y, c - 1, axis=1)
        prv, nxt = (r_a, r_b) if roll_like_jnp else (r_b, r_a)
        lane = lax.broadcasted_iota(jnp.int32, y.shape, 1)
        swapped = jnp.where(lane % 2 == 0, nxt, prv)     # pair swap 2i <-> 2i+1
        return y * cos + swapped * sin

    q = jnp.dot(x, wq_ref[...], preferred_element_type=jnp.float32)
    q_ref[0] = rope(q, cq_ref[...], sq_ref[...], n_heads).astype(q_ref.dtype)

    k = jnp.dot(x, wk_ref[...], preferred_element_type=jnp.float32)
    k_ref[0] = rope(k, ck_ref[...], sk_ref[...], n_kv_heads).astype(k_ref.dtype)

    v_ref[0] = jnp.dot(x, wv_ref[...],
                       preferred_element_type=jnp.float32).astype(v_ref.dtype)


# ------------- Kernel 2: causal flash attention (GQA group) fused with Wo -------
def flash_attn_wo_kernel(q_ref, k_ref, v_ref, wo_ref, o_ref,
                         m_sc, l_sc, acc_sc,
                         *, tq, tk, n_rep, head_dim):
    qi = pl.program_id(1)
    g = pl.program_id(2)
    ki = pl.program_id(3)
    # last KV tile that intersects the causal region of this Q tile
    last_rel = (qi * tq + tq - 1) // tk

    @pl.when((g == 0) & (ki == 0))
    def _zero_out():
        o_ref[...] = jnp.zeros_like(o_ref)

    @pl.when(ki == 0)
    def _reset_state():
        m_sc[...] = jnp.full_like(m_sc, -jnp.inf)
        l_sc[...] = jnp.zeros_like(l_sc)
        acc_sc[...] = jnp.zeros_like(acc_sc)

    @pl.when(ki <= last_rel)                       # skip fully masked KV tiles
    def _compute():
        qg = q_ref[0]                              # (tq, n_rep*hd) bf16, pre-scaled
        k = k_ref[0]                               # (tk, hd) bf16
        v = v_ref[0]                               # (tk, hd) bf16
        row = qi * tq + lax.broadcasted_iota(jnp.int32, (tq, tk), 0)
        col = ki * tk + lax.broadcasted_iota(jnp.int32, (tq, tk), 1)
        causal = row >= col
        for r in range(n_rep):                     # unrolled, n_rep is small
            qh = qg[:, r * head_dim:(r + 1) * head_dim]
            s = jnp.dot(qh, k.T, preferred_element_type=jnp.float32)
            s = jnp.where(causal, s, -1e30)
            m_prev = m_sc[r]
            m_new = jnp.maximum(m_prev, jnp.max(s, axis=-1, keepdims=True))
            alpha = jnp.exp(m_prev - m_new)
            p = jnp.exp(s - m_new)
            l_sc[r] = alpha * l_sc[r] + jnp.sum(p, axis=-1, keepdims=True)
            acc_sc[r] = alpha * acc_sc[r] + jnp.dot(
                p.astype(v.dtype), v, preferred_element_type=jnp.float32)
            m_sc[r] = m_new

    @pl.when(ki == last_rel)
    def _finalize():
        parts = [acc_sc[r] * pl.reciprocal(l_sc[r], approx=True)
                 for r in range(n_rep)]
        attn = jnp.concatenate(parts, axis=-1).astype(wo_ref.dtype)  # (tq, n_rep*hd)
        o_ref[0] += jnp.dot(attn, wo_ref[...],
                            preferred_element_type=jnp.float32)


# ----------------------------------- Wrapper -------------------------------------
def precompute_freqs_cis(dim, end, theta=10000.0):
    freqs = 1.0 / (theta ** (jnp.arange(0, dim, 2)[: dim // 2].astype(jnp.float32) / dim))
    t = jnp.arange(end, dtype=jnp.float32)
    freqs = jnp.outer(t, freqs)                   # (end, dim//2)
    return jnp.cos(freqs), jnp.sin(freqs)


def attention_forward(x, wq, wk, wv, wo, freqs_cos, freqs_sin,
                      n_heads, n_kv_heads, head_dim,
                      *, tq_proj=None, tq=None, tk=None):
    B, S, D = x.shape
    n_rep = n_heads // n_kv_heads
    q_dim = n_heads * head_dim
    kv_dim = n_kv_heads * head_dim
    scale = 1.0 / math.sqrt(head_dim)

    # Lane-alignment of per-(kv)head blocks in kernel 2.
    assert head_dim % 128 == 0, "head_dim must be a multiple of 128 lanes"
    tq_proj = tq_proj or min(S, 256)
    tq = tq or min(S, 128)
    tk = tk or min(S, 256)
    assert S % tq_proj == 0 and S % tq == 0 and S % tk == 0
    assert tq_proj % 8 == 0 and tq % 8 == 0 and tk % 8 == 0

    # ---- host-side glue: dtype / layout prep (one-time) ----
    xb = x.astype(jnp.bfloat16)
    wq_t = wq.T.astype(jnp.bfloat16)              # (D, q_dim)
    wk_t = wk.T.astype(jnp.bfloat16)              # (D, kv_dim)
    wv_t = wv.T.astype(jnp.bfloat16)              # (D, kv_dim)
    wo_t = wo.T.astype(jnp.bfloat16)              # (q_dim, D)

    # RoPE tables, (S, head_dim), interleaved-pair layout; the 1/sqrt(hd)
    # softmax scale is folded into the Q-path tables (free).
    cos = freqs_cos[:S]
    sin = freqs_sin[:S]
    cos_i = jnp.repeat(cos, 2, axis=-1)                            # [c0,c0,c1,c1,..]
    sin_i = jnp.stack([-sin, sin], axis=-1).reshape(S, head_dim)   # [-s0,s0,..]
    cos_q = (cos_i * scale).astype(jnp.float32)
    sin_q = (sin_i * scale).astype(jnp.float32)
    cos_k = cos_i.astype(jnp.float32)
    sin_k = sin_i.astype(jnp.float32)

    roll_like_jnp = _roll_matches_jnp()

    # ---- kernel 1: fused QKV projection + RoPE, tiled over (batch, rows) ----
    k1 = functools.partial(qkv_rope_kernel, n_heads=n_heads,
                           n_kv_heads=n_kv_heads, roll_like_jnp=roll_like_jnp)
    q_r, k_r, v_r = pl.pallas_call(
        k1,
        grid=(B, S // tq_proj),
        in_specs=[
            pl.BlockSpec((1, tq_proj, D), lambda b, s: (b, s, 0)),
            pl.BlockSpec((D, q_dim), lambda b, s: (0, 0)),
            pl.BlockSpec((D, kv_dim), lambda b, s: (0, 0)),
            pl.BlockSpec((D, kv_dim), lambda b, s: (0, 0)),
            pl.BlockSpec((tq_proj, head_dim), lambda b, s: (s, 0)),
            pl.BlockSpec((tq_proj, head_dim), lambda b, s: (s, 0)),
            pl.BlockSpec((tq_proj, head_dim), lambda b, s: (s, 0)),
            pl.BlockSpec((tq_proj, head_dim), lambda b, s: (s, 0)),
        ],
        out_specs=[
            pl.BlockSpec((1, tq_proj, q_dim), lambda b, s: (b, s, 0)),
            pl.BlockSpec((1, tq_proj, kv_dim), lambda b, s: (b, s, 0)),
            pl.BlockSpec((1, tq_proj, kv_dim), lambda b, s: (b, s, 0)),
        ],
        out_shape=[
            jax.ShapeDtypeStruct((B, S, q_dim), jnp.bfloat16),
            jax.ShapeDtypeStruct((B, S, kv_dim), jnp.bfloat16),
            jax.ShapeDtypeStruct((B, S, kv_dim), jnp.bfloat16),
        ],
        compiler_params=pltpu.CompilerParams(
            dimension_semantics=("parallel", "parallel")),
    )(xb, wq_t, wk_t, wv_t, cos_q, sin_q, cos_k, sin_k)

    # ---- kernel 2: flash causal attention (GQA head-group) fused with Wo ----
    gq = n_rep * head_dim

    def kv_map(b, qi_, g, ki_):
        # clamp skipped (fully masked) KV tiles to the last useful one so the
        # pipeline does not issue useless DMAs for them
        return (b, jnp.minimum(ki_, (qi_ * tq + tq - 1) // tk), g)

    k2 = functools.partial(flash_attn_wo_kernel, tq=tq, tk=tk,
                           n_rep=n_rep, head_dim=head_dim)
    out = pl.pallas_call(
        k2,
        grid=(B, S // tq, n_kv_heads, S // tk),
        in_specs=[
            pl.BlockSpec((1, tq, gq), lambda b, qi_, g, ki_: (b, qi_, g)),
            pl.BlockSpec((1, tk, head_dim), kv_map),
            pl.BlockSpec((1, tk, head_dim), kv_map),
            pl.BlockSpec((gq, D), lambda b, qi_, g, ki_: (g, 0)),
        ],
        out_specs=pl.BlockSpec((1, tq, D), lambda b, qi_, g, ki_: (b, qi_, 0)),
        out_shape=jax.ShapeDtypeStruct((B, S, D), jnp.float32),
        scratch_shapes=[
            pltpu.VMEM((n_rep, tq, 1), jnp.float32),          # running max
            pltpu.VMEM((n_rep, tq, 1), jnp.float32),          # running denom
            pltpu.VMEM((n_rep, tq, head_dim), jnp.float32),   # running numerator
        ],
        compiler_params=pltpu.CompilerParams(
            dimension_semantics=("parallel", "parallel", "arbitrary", "arbitrary")),
    )(q_r, k_r, v_r, wo_t)
    return out


# ------------------------------ pure-JAX reference ------------------------------
def attention_reference(x, wq, wk, wv, wo, freqs_cos, freqs_sin,
                        n_heads, n_kv_heads, head_dim):
    B, S, D = x.shape
    n_rep = n_heads // n_kv_heads
    q = (x @ wq.T).reshape(B, S, n_heads, head_dim)
    k = (x @ wk.T).reshape(B, S, n_kv_heads, head_dim)
    v = (x @ wv.T).reshape(B, S, n_kv_heads, head_dim)

    cos = freqs_cos[:S][None, :, None, :]
    sin = freqs_sin[:S][None, :, None, :]

    def rope(t):
        tr, ti = t[..., 0::2], t[..., 1::2]
        out_r = tr * cos - ti * sin
        out_i = tr * sin + ti * cos
        return jnp.stack([out_r, out_i], axis=-1).reshape(t.shape)

    q, k = rope(q), rope(k)
    q = q.transpose(0, 2, 1, 3)
    k = jnp.repeat(k.transpose(0, 2, 1, 3), n_rep, axis=1)
    v = jnp.repeat(v.transpose(0, 2, 1, 3), n_rep, axis=1)

    s = jnp.einsum("bhqd,bhkd->bhqk", q, k) / math.sqrt(head_dim)
    mask = jnp.tril(jnp.ones((S, S), dtype=bool))
    s = jnp.where(mask, s, -jnp.inf)
    p = jax.nn.softmax(s, axis=-1)
    o = jnp.einsum("bhqk,bhkd->bhqd", p, v)
    o = o.transpose(0, 2, 1, 3).reshape(B, S, n_heads * head_dim)
    return o @ wo.T


# ------------------------------------ main ---------------------------------------
if __name__ == "__main__":
    # Small but hardware-representative shapes: head_dim = 128 (real Llama head
    # size) keeps every per-head block 128-lane aligned; GQA with n_rep = 2.
    B, S = 2, 32
    dim = 512
    n_heads = 4
    n_kv_heads = 2
    head_dim = dim // n_heads        # 128
    rope_base = 10000.0
    max_seq_len = 64

    key = jax.random.PRNGKey(0)
    kx, kq, kk, kv, ko = jax.random.split(key, 5)
    x = jax.random.normal(kx, (B, S, dim), dtype=jnp.float32)
    # nn.Linear weights are (out_features, in_features), bias=False
    wq = 0.05 * jax.random.normal(kq, (n_heads * head_dim, dim), dtype=jnp.float32)
    wk = 0.05 * jax.random.normal(kk, (n_kv_heads * head_dim, dim), dtype=jnp.float32)
    wv = 0.05 * jax.random.normal(kv, (n_kv_heads * head_dim, dim), dtype=jnp.float32)
    wo = 0.05 * jax.random.normal(ko, (dim, n_heads * head_dim), dtype=jnp.float32)

    freqs_cos, freqs_sin = precompute_freqs_cis(head_dim, 2 * max_seq_len, rope_base)

    out = attention_forward(x, wq, wk, wv, wo, freqs_cos, freqs_sin,
                            n_heads, n_kv_heads, head_dim,
                            tq_proj=16, tq=16, tk=16)
    out = jax.block_until_ready(out)

    ref = attention_reference(x, wq, wk, wv, wo, freqs_cos, freqs_sin,
                              n_heads, n_kv_heads, head_dim)
    assert out.shape == (B, S, dim)
    max_err = float(jnp.max(jnp.abs(out - ref)))
    # bf16 MXU operands + bf16 Q/K/V intermediates -> relaxed tolerance vs the
    # fp32 reference; structural bugs would be orders of magnitude larger.
    assert jnp.allclose(out, ref, rtol=5e-2, atol=5e-2), f"max abs err {max_err}"

    print("KERNEL_OK")
</pallas_src>

<mosaic_0001>
module attributes {stable_mosaic.version = 11 : i64} {
  func.func @_kernel(%arg0: memref<8x128xf32, #tpu.memory_space<vmem>>, %arg1: memref<8x128xf32, #tpu.memory_space<vmem>>) attributes {dimension_semantics = [], scalar_prefetch = 0 : i64, scratch_operands = 0 : i64, tpu.core_type = #tpu.core_type<tc>} {
    %c0 = arith.constant 0 : index
    %c0_0 = arith.constant 0 : index
    %0 = vector.load %arg0[%c0, %c0_0] : memref<8x128xf32, #tpu.memory_space<vmem>>, vector<8x128xf32>
    %c1_i32 = arith.constant 1 : i32
    %1 = tpu.dynamic_rotate %0 by %c1_i32 dim 1 : vector<8x128xf32>, i32 -> vector<8x128xf32>
    %c0_1 = arith.constant 0 : index
    %c0_2 = arith.constant 0 : index
    %2 = vector.load %arg1[%c0_1, %c0_2] : memref<8x128xf32, #tpu.memory_space<vmem>>, vector<8x128xf32>
    tpu.vector_store %arg1[%c0_1, %c0_2], %1 {strides = array<i32>} : memref<8x128xf32, #tpu.memory_space<vmem>>, vector<8x128xf32>,
    return
  }
}

</mosaic_0001>

<llo_original>
// kernel: tpu_custom_call.1
$region0: #{tpu_custom_call.1}
  #allocation0 [shape = 'u32[]', space=smem, size = 0x4, offset = 0x4, fixed_abs, tag = 'smem constant byte address 0x4 - core index']
  #allocation1 [shape = 'u32[72,128]{1,0:T(1,128)}', space=vmem, size = 0x9000, scoped, tag = 'internal scratch']
  %s0 = inlined_call_operand.hbm [shape: f32[8,128], index: 0, kind: input, shape index: {}]
  %s1 = inlined_call_operand.hbm [shape: f32[8,128], index: 1, kind: output, shape index: {}]
  %s2 = sld [smem:[#allocation0]]
  $region18: #{tpu_custom_call.1} parent=0
    _
  %s4 = ssub.s32 1, %s2
  %s5 = scalar_select 0, %s4, %s2
  $region1: #{tpu_custom_call.1} parent=0
    #allocation2 [shape = 'u8[4096]{0}', space=vmem, size = 0x1000, scoped, tag = 'input window, operand 0, single buffered']
    #allocation3 [shape = 's32[1]{0}', space=sflag, size = 0x4, scoped, tag = 'scoped memory for tpu_custom_call.1']
    #allocation4 [shape = 's32[1]{0}', space=sflag, size = 0x4, scoped, tag = 'scoped memory for tpu_custom_call.1']
    #allocation5 [shape = 'u8[4096]{0}', space=vmem, size = 0x1000, scoped, tag = 'output window, operand 0, single buffered']
    %6 = vsyncpa [#allocation3], 0
    %7 = vsyncpa [#allocation4], 0
    // Predicated region
    $region2: #{tpu_custom_call.1} parent=1 // pred_check
      _
    $region3: #{tpu_custom_call.1} parent=1 // pred_check_branch
      %9 = sbr.rel (0) target = $region5
    $region4: #{tpu_custom_call.1} parent=1 // pred_region
      %11 = vsyncadd [#allocation3], 0
      %s13 = sshll.u32 %s0, 4
      %s14 = int_to_ptr.hbm [resolvable:$true] %s13
      %s15 = sshll.u32 [#allocation2], 4
      %s16 = int_to_ptr.vmem [resolvable:$true] %s15
      %18 = dma.hbm_to_vmem [thread:$0]  %s14, 128, %s16, [#allocation3]
    $region5: #{tpu_custom_call.1} parent=1 // pred_fallthru
      _
    // Predicated region
    $region6: #{tpu_custom_call.1} parent=1 // pred_check
      _
    $region7: #{tpu_custom_call.1} parent=1 // pred_check_branch
      %20 = sbr.rel (0) target = $region9
    $region8: #{tpu_custom_call.1} parent=1 // pred_region
      %22 = dma.done [#allocation3], 128
    $region9: #{tpu_custom_call.1} parent=1 // pred_fallthru
      _
    %v23 = vld [vmem:[#allocation2] sm:$0xff]
    %24 = vrot.lane.b32.xlu0 %v23, 1
    %v25 = vpop.permute.xlu0 %24
    %26 = vst [vmem:[#allocation5] sm:$0xff] %v25
    // Predicated region
    $region10: #{tpu_custom_call.1} parent=1 // pred_check
      _
    $region11: #{tpu_custom_call.1} parent=1 // pred_check_branch
      %28 = sbr.rel (0) target = $region13
    $region12: #{tpu_custom_call.1} parent=1 // pred_region
      %30 = vsyncadd [#allocation4], 0
      %s32 = sshll.u32 [#allocation5], 4
      %s33 = int_to_ptr.vmem [resolvable:$true] %s32
      %s34 = sshll.u32 %s1, 4
      %s35 = int_to_ptr.hbm [resolvable:$true] %s34
      %37 = dma.vmem_to_hbm [thread:$0]  %s33, 128, %s35, [#allocation4]
    $region13: #{tpu_custom_call.1} parent=1 // pred_fallthru
      _
    // Predicated region
    $region14: #{tpu_custom_call.1} parent=1 // pred_check
      _
    $region15: #{tpu_custom_call.1} parent=1 // pred_check_branch
      %39 = sbr.rel (0) target = $region17
    $region16: #{tpu_custom_call.1} parent=1 // pred_region
      %41 = dma.done [#allocation4], 128
    $region17: #{tpu_custom_call.1} parent=1 // pred_fallthru
      _
    %42 = vsyncpa [#allocation3], 1
    %43 = vsyncpa [#allocation4], 1

</llo_original>
